<compile_context>
chip_gen: v6e
topology: v6e:2x2x1
jax: 0.10.0
libtpu: 0.0.40
codegen_flags: <defaults>
</compile_context>

<pallas_src>
import numpy as np
import jax
import jax.numpy as jnp
from jax.experimental import pallas as pl
from jax.experimental.pallas import tpu as pltpu

MAX_LANE_BLOCK = 65536   # pair-rows (lanes) per grid step; packed input block = 2 MiB


def _pair_union_kernel(starts_ref, vals_ref, ab_ref, o_ref):
    # starts_ref: (n_seg,) int32 SMEM -- first pair-row of each non-empty image
    # vals_ref:   (n_seg,) int32 SMEM -- (img_num % batch_size) for that image
    # ab_ref:     (8, BM) f32 -- rows 0:4 = box A [x1,y1,x2,y2], rows 4:8 = box B
    # o_ref:      (5, BM) f32 -- rows [img, min_x1, min_y1, max_x2, max_y2]
    a = ab_ref[0:4, :]
    b = ab_ref[4:8, :]
    sub = jax.lax.broadcasted_iota(jnp.int32, a.shape, 0)       # sublane idx 0..3
    union = jnp.where(sub < 2, jnp.minimum(a, b), jnp.maximum(a, b))

    # Synthesize the image-index row from the SMEM segment table:
    #   img(lane) = sum_i [gidx >= starts[i]] * (vals[i] - vals[i-1])
    bm = o_ref.shape[1]
    lane = jax.lax.broadcasted_iota(jnp.int32, (1, bm), 1)
    gidx = lane + pl.program_id(0) * bm                         # global pair index
    n_seg = starts_ref.shape[0]                                 # static (host int)
    img = jnp.zeros((1, bm), jnp.int32)
    prev = None
    for i in range(n_seg):                                      # unrolled at trace time
        val = vals_ref[i]
        delta = val if prev is None else val - prev
        img = img + jnp.where(gidx >= starts_ref[i], delta, 0)
        prev = val

    o_ref[0:1, :] = img.astype(jnp.float32)
    o_ref[1:5, :] = union


def _pair_union_pallas(ab_t, seg_starts, seg_vals, bm):
    _, m_pad = ab_t.shape
    grid = (m_pad // bm,)
    return pl.pallas_call(
        _pair_union_kernel,
        out_shape=jax.ShapeDtypeStruct((5, m_pad), jnp.float32),
        grid_spec=pltpu.PrefetchScalarGridSpec(
            num_scalar_prefetch=2,
            grid=grid,
            in_specs=[pl.BlockSpec((8, bm), lambda i, starts, vals: (0, i))],
            out_specs=pl.BlockSpec((5, bm), lambda i, starts, vals: (0, i)),
        ),
        compiler_params=pltpu.CompilerParams(
            dimension_semantics=("parallel",),        # shards grid across TCs on v7x
            vmem_limit_bytes=32 * 1024 * 1024),
    )(seg_starts, seg_vals, ab_t)


def rois_pair_expand(rois, batch_size, object_num):
    """JAX equivalent of RoisPairExpandLayer.forward.

    rois: (N, 5) array, columns [old_batch_idx, x1, y1, x2, y2]
    batch_size: python int
    object_num: python sequence of per-image object counts (static -- the
                output row count depends on it)
    """
    # TODO(synk): object_num must be static (host ints); a traced object_num
    # would imply a dynamic output shape, which JAX/Pallas cannot express.
    object_num = [int(n) for n in object_num]

    # Vectorized host-side pair enumeration (original rois first, then the
    # upper-triangular pairs, per image) -- avoids O(sum n^2) Python loops.
    idx_a_parts, idx_b_parts = [], []
    seg_starts, seg_vals = [], []
    begin = 0       # row offset in the input rois
    cursor = 0      # row offset in the expanded output
    for img_num, n in enumerate(object_num):
        if n >= 1:
            base = begin + np.arange(n, dtype=np.int64)
            iu0, iu1 = np.triu_indices(n, k=1)
            idx_a_parts.append(np.concatenate([base, begin + iu0]))
            idx_b_parts.append(np.concatenate([base, begin + iu1]))
            seg_starts.append(cursor)
            seg_vals.append(img_num % batch_size)
            cursor += n + iu0.size
        begin += n

    if not idx_a_parts:
        return jnp.zeros((0, 5), jnp.float32)

    idx_a = np.concatenate(idx_a_parts).astype(np.int32)
    idx_b = np.concatenate(idx_b_parts).astype(np.int32)
    m = idx_a.shape[0]

    # Pad M to a multiple of 128 and pick the lane-block size.  If there are
    # >= 2 chunks of 128 lanes, force >= 2 roughly balanced grid steps so the
    # "parallel" grid axis can shard across v7x's two TensorCores; cap the
    # block at MAX_LANE_BLOCK so the double-buffered footprint stays small.
    m_pad128 = ((m + 127) // 128) * 128
    n128 = m_pad128 // 128
    if n128 >= 2:
        bm = min(MAX_LANE_BLOCK // 128, (n128 + 1) // 2) * 128
    else:
        bm = 128
    m_pad = ((m + bm - 1) // bm) * bm
    pad = m_pad - m
    idx_a = np.pad(idx_a, (0, pad))   # pad with index 0 (valid: at least one ROI)
    idx_b = np.pad(idx_b, (0, pad))

    # TODO(synk): the row gather is left to XLA (fused gather into the packed
    # lane-dense (8, M_pad) slab); fusing it into the kernel would need an
    # in-kernel cross-lane gather.
    coords_t = jnp.asarray(rois)[:, 1:5].astype(jnp.float32).T           # (4, N)
    a_t = jnp.take(coords_t, jnp.asarray(idx_a), axis=1)                 # (4, M_pad)
    b_t = jnp.take(coords_t, jnp.asarray(idx_b), axis=1)                 # (4, M_pad)
    ab_t = jnp.concatenate([a_t, b_t], axis=0)                           # (8, M_pad)

    starts = jnp.asarray(np.asarray(seg_starts, np.int32))
    vals = jnp.asarray(np.asarray(seg_vals, np.int32))

    out_t = _pair_union_pallas(ab_t, starts, vals, bm)                   # (5, M_pad)
    # TODO(synk): if downstream can consume the lane-major (5, M) slab,
    # return out_t[:, :m] directly and skip this final relayout.
    return out_t[:, :m].T                                                # (M, 5)


def _reference_numpy(rois, batch_size, object_num):
    """Direct NumPy transcription of the PyTorch forward (for verification)."""
    out_rows = []
    begin = 0
    for img_num, n in enumerate(object_num):
        n = int(n)
        coords = rois[begin:begin + n, 1:5]
        if n >= 1:
            rows = [coords[i] for i in range(n)]
            for b1 in range(n):
                for b2 in range(b1 + 1, n):
                    tmin = np.minimum(coords[b1, 0:2], coords[b2, 0:2])
                    tmax = np.maximum(coords[b1, 2:4], coords[b2, 2:4])
                    rows.append(np.concatenate([tmin, tmax], 0))
            col = float(img_num % batch_size)
            for r in rows:
                out_rows.append(np.concatenate([[col], r], 0))
        begin += n
    if not out_rows:
        return np.zeros((0, 5), np.float32)
    return np.stack(out_rows, 0).astype(np.float32)


def _make_rois(key, batch_size, object_num):
    total = int(sum(object_num))
    k1, k2 = jax.random.split(key)
    xy1 = jax.random.uniform(k1, (total, 2), jnp.float32, 0.0, 8.0)
    wh = jax.random.uniform(k2, (total, 2), jnp.float32, 1.0, 8.0)
    coords = jnp.concatenate([xy1, xy1 + wh], axis=1)              # x1,y1,x2,y2
    img_idx = jnp.asarray(
        np.repeat(np.arange(len(object_num)) % batch_size,
                  np.asarray(object_num)), jnp.float32)[:, None]
    return jnp.concatenate([img_idx, coords], axis=1)              # (total, 5)


if __name__ == "__main__":
    key = jax.random.PRNGKey(0)

    # Case 1: small mixed counts.
    batch_size = 2
    object_num = [2, 1, 3]
    rois = _make_rois(key, batch_size, object_num)
    out = jax.block_until_ready(rois_pair_expand(rois, batch_size, object_num))
    ref = _reference_numpy(np.asarray(rois), batch_size, object_num)
    assert out.shape == ref.shape, (out.shape, ref.shape)
    np.testing.assert_allclose(np.asarray(out), ref, rtol=1e-6, atol=1e-6)

    # Case 2: includes an empty image and a single-object image.
    batch_size2 = 3
    object_num2 = [5, 0, 1, 4]
    rois2 = _make_rois(jax.random.PRNGKey(1), batch_size2, object_num2)
    out2 = jax.block_until_ready(
        rois_pair_expand(rois2, batch_size2, object_num2))
    ref2 = _reference_numpy(np.asarray(rois2), batch_size2, object_num2)
    assert out2.shape == ref2.shape, (out2.shape, ref2.shape)
    np.testing.assert_allclose(np.asarray(out2), ref2, rtol=1e-6, atol=1e-6)

    # Case 3: larger counts -> multiple grid steps (>= 2, v7x megacore path)
    # and segment boundaries crossing lane blocks.
    batch_size3 = 4
    object_num3 = [20, 13, 0, 17, 9]
    rois3 = _make_rois(jax.random.PRNGKey(2), batch_size3, object_num3)
    out3 = jax.block_until_ready(
        rois_pair_expand(rois3, batch_size3, object_num3))
    ref3 = _reference_numpy(np.asarray(rois3), batch_size3, object_num3)
    assert out3.shape == ref3.shape, (out3.shape, ref3.shape)
    np.testing.assert_allclose(np.asarray(out3), ref3, rtol=1e-6, atol=1e-6)

    print("KERNEL_OK")
</pallas_src>

<mosaic_0001>
module attributes {stable_mosaic.version = 11 : i64} {
  func.func @_pair_union_kernel(%arg0: i32, %arg1: memref<3xi32, #tpu.memory_space<smem>>, %arg2: memref<3xi32, #tpu.memory_space<smem>>, %arg3: memref<8x128xf32, #tpu.memory_space<vmem>>, %arg4: memref<5x128xf32, #tpu.memory_space<vmem>>) attributes {dimension_semantics = [#tpu.dimension_semantics<parallel>], iteration_bounds = array<i64: 1>, scalar_prefetch = 2 : i64, scratch_operands = 0 : i64, tpu.core_type = #tpu.core_type<tc>, window_params = [{transform_indices = @transform_0, window_bounds = array<i64: 8, 128>}, {transform_indices = @transform_1, window_bounds = array<i64: 5, 128>}]} {
    %c0 = arith.constant 0 : index
    %c0_0 = arith.constant 0 : index
    %0 = vector.load %arg3[%c0, %c0_0] : memref<8x128xf32, #tpu.memory_space<vmem>>, vector<4x128xf32>
    %c4 = arith.constant 4 : index
    %c0_1 = arith.constant 0 : index
    %1 = vector.load %arg3[%c4, %c0_1] : memref<8x128xf32, #tpu.memory_space<vmem>>, vector<4x128xf32>
    %2 = tpu.iota {dimensions = array<i32: 0>} : vector<4x128xi32>
    %c2_i32 = arith.constant 2 : i32
    %3 = vector.broadcast %c2_i32 : i32 to vector<4x128xi32>
    %4 = arith.cmpi slt, %2, %3 : vector<4x128xi32>
    %5 = arith.minimumf %0, %1 : vector<4x128xf32>
    %6 = arith.maximumf %0, %1 : vector<4x128xf32>
    %7 = arith.select %4, %5, %6 : vector<4x128xi1>, vector<4x128xf32>
    %8 = tpu.iota {dimensions = array<i32: 1>} : vector<1x128xi32>
    %c128_i32 = arith.constant 128 : i32
    %9 = arith.muli %arg0, %c128_i32 : i32
    %10 = vector.broadcast %9 : i32 to vector<1x128xi32>
    %11 = arith.addi %8, %10 : vector<1x128xi32>
    %c0_i32 = arith.constant 0 : i32
    %12 = vector.broadcast %c0_i32 : i32 to vector<1x128xi32>
    %c0_2 = arith.constant 0 : index
    %13 = memref.load %arg2[%c0_2] : memref<3xi32, #tpu.memory_space<smem>>
    %c0_3 = arith.constant 0 : index
    %14 = memref.load %arg1[%c0_3] : memref<3xi32, #tpu.memory_space<smem>>
    %15 = vector.broadcast %14 : i32 to vector<1x128xi32>
    %16 = arith.cmpi sge, %11, %15 : vector<1x128xi32>
    %c0_i32_4 = arith.constant 0 : i32
    %17 = vector.broadcast %13 : i32 to vector<1x128xi32>
    %18 = vector.broadcast %c0_i32_4 : i32 to vector<1x128xi32>
    %19 = arith.select %16, %17, %18 : vector<1x128xi1>, vector<1x128xi32>
    %20 = arith.addi %12, %19 : vector<1x128xi32>
    %c1 = arith.constant 1 : index
    %21 = memref.load %arg2[%c1] : memref<3xi32, #tpu.memory_space<smem>>
    %22 = arith.subi %21, %13 : i32
    %c1_5 = arith.constant 1 : index
    %23 = memref.load %arg1[%c1_5] : memref<3xi32, #tpu.memory_space<smem>>
    %24 = vector.broadcast %23 : i32 to vector<1x128xi32>
    %25 = arith.cmpi sge, %11, %24 : vector<1x128xi32>
    %c0_i32_6 = arith.constant 0 : i32
    %26 = vector.broadcast %22 : i32 to vector<1x128xi32>
    %27 = vector.broadcast %c0_i32_6 : i32 to vector<1x128xi32>
    %28 = arith.select %25, %26, %27 : vector<1x128xi1>, vector<1x128xi32>
    %29 = arith.addi %20, %28 : vector<1x128xi32>
    %c2 = arith.constant 2 : index
    %30 = memref.load %arg2[%c2] : memref<3xi32, #tpu.memory_space<smem>>
    %31 = arith.subi %30, %21 : i32
    %c2_7 = arith.constant 2 : index
    %32 = memref.load %arg1[%c2_7] : memref<3xi32, #tpu.memory_space<smem>>
    %33 = vector.broadcast %32 : i32 to vector<1x128xi32>
    %34 = arith.cmpi sge, %11, %33 : vector<1x128xi32>
    %c0_i32_8 = arith.constant 0 : i32
    %35 = vector.broadcast %31 : i32 to vector<1x128xi32>
    %36 = vector.broadcast %c0_i32_8 : i32 to vector<1x128xi32>
    %37 = arith.select %34, %35, %36 : vector<1x128xi1>, vector<1x128xi32>
    %38 = arith.addi %29, %37 : vector<1x128xi32>
    %39 = arith.sitofp %38 : vector<1x128xi32> to vector<1x128xf32>
    %c0_9 = arith.constant 0 : index
    %c0_10 = arith.constant 0 : index
    %40 = vector.load %arg4[%c0_9, %c0_10] : memref<5x128xf32, #tpu.memory_space<vmem>>, vector<1x128xf32>
    tpu.vector_store %arg4[%c0_9, %c0_10], %39 {strides = array<i32>} : memref<5x128xf32, #tpu.memory_space<vmem>>, vector<1x128xf32>,
    %c1_11 = arith.constant 1 : index
    %c0_12 = arith.constant 0 : index
    %41 = vector.load %arg4[%c1_11, %c0_12] : memref<5x128xf32, #tpu.memory_space<vmem>>, vector<4x128xf32>
    tpu.vector_store %arg4[%c1_11, %c0_12], %7 {strides = array<i32>} : memref<5x128xf32, #tpu.memory_space<vmem>>, vector<4x128xf32>,
    return
  }
  func.func @transform_0(%arg0: i32, %arg1: memref<3xi32, #tpu.memory_space<smem>>, %arg2: memref<3xi32, #tpu.memory_space<smem>>) -> (i32, i32) {
    %c0_i32 = arith.constant 0 : i32
    %c0_i32_0 = arith.constant 0 : i32
    return %c0_i32, %arg0 : i32, i32
  }
  func.func @transform_1(%arg0: i32, %arg1: memref<3xi32, #tpu.memory_space<smem>>, %arg2: memref<3xi32, #tpu.memory_space<smem>>) -> (i32, i32) {
    %c0_i32 = arith.constant 0 : i32
    %c0_i32_0 = arith.constant 0 : i32
    return %c0_i32, %arg0 : i32, i32
  }
}

</mosaic_0001>

<llo_original>
// kernel: tpu_custom_call.1
$region0: #{tpu_custom_call.1}
  #allocation0 [shape = 'u32[]', space=smem, size = 0x4, offset = 0x4, fixed_abs, tag = 'smem constant byte address 0x4 - core index']
  #allocation1 [shape = 'u32[144,128]{1,0:T(1,128)}', space=vmem, size = 0x12000, scoped, tag = 'internal scratch']
  #allocation2 [shape = 's32[1]{0}', space=sflag, size = 0x4, scoped, tag = 'scoped memory for tpu_custom_call.1']
  #allocation3 [shape = 'u8[512]{0}', space=smem, size = 0x200, scoped, tag = 'prefetched SMEM operand 0']
  #allocation4 [shape = 'u8[512]{0}', space=smem, size = 0x200, scoped, tag = 'prefetched SMEM operand 1']
  %s0 = inlined_call_operand.hbm [shape: s32[3], index: 0, kind: input, shape index: {}]
  %s1 = inlined_call_operand.vmem [shape: s32[3], index: 1, kind: input, shape index: {}]
  %s2 = inlined_call_operand.hbm [shape: f32[8,128], index: 2, kind: input, shape index: {}]
  %s3 = inlined_call_operand.hbm [shape: f32[5,128], index: 3, kind: output, shape index: {}]
  %s4 = sld [smem:[#allocation0]]
  $region18: #{tpu_custom_call.1} parent=0
    _
  %s6 = ssub.s32 1, %s4
  %s7 = scalar_select 0, %s6, %s4
  %9 = dma.hbm_to_smem %s0, 16, [#allocation3], [#allocation2]
  %s10 = sshll.u32 %s1, 4
  %s11 = int_to_ptr.vmem [resolvable:$true] %s10
  %13 = dma.vmem_to_smem %s11, 16, [#allocation4], [#allocation2]
  %14 = dma.done [#allocation2], 32
  %15 = sfence
  $region1: #{tpu_custom_call.1} parent=0
    #allocation5 [shape = 'u8[4096]{0}', space=vmem, size = 0x1000, scoped, tag = 'input window, operand 2, single buffered']
    #allocation6 [shape = 's32[1]{0}', space=sflag, size = 0x4, scoped, tag = 'scoped memory for tpu_custom_call.1']
    #allocation7 [shape = 's32[1]{0}', space=sflag, size = 0x4, scoped, tag = 'scoped memory for tpu_custom_call.1']
    #allocation8 [shape = 'u8[4096]{0}', space=vmem, size = 0x1000, scoped, tag = 'output window, operand 0, single buffered']
    %16 = vsyncpa [#allocation6], 0
    %17 = vsyncpa [#allocation7], 0
    // Predicated region
    $region2: #{tpu_custom_call.1} parent=1 // pred_check
      _
    $region3: #{tpu_custom_call.1} parent=1 // pred_check_branch
      %19 = sbr.rel (0) target = $region5
    $region4: #{tpu_custom_call.1} parent=1 // pred_region
      %s21 = ssub.s32 128, 128
      %22 = vsyncadd [#allocation6], %s21
      %s24 = sshll.u32 [#allocation5], 4
      %s25 = int_to_ptr.vmem [resolvable:$true] %s24
      %27 = dma.hbm_to_vmem [thread:$0]  %s2, 128, %s25, [#allocation6]
    $region5: #{tpu_custom_call.1} parent=1 // pred_fallthru
      _
    // Predicated region
    $region6: #{tpu_custom_call.1} parent=1 // pred_check
      _
    $region7: #{tpu_custom_call.1} parent=1 // pred_check_branch
      %29 = sbr.rel (0) target = $region9
    $region8: #{tpu_custom_call.1} parent=1 // pred_region
      %30 = dma.done [#allocation6], 128
    $region9: #{tpu_custom_call.1} parent=1 // pred_fallthru
      _
    %v31 = vld [vmem:[#allocation5] sm:$0xf]
    %v32 = vld [vmem:[#allocation5 + $0x4] sm:$0xf]
    %v33 = vlaneseq
    %v34 = vshrl.u32 %v33, 7
    %vm35 = vcmp.lt.s32.totalorder %v34, 2
    %v36 = vmin.f32 %v31, %v32
    %v37 = vmax.f32 %v31, %v32
    %v38 = vsel %vm35, %v36, %v37
    %v39 = vlaneseq
    %v40 = vand.u32 %v39, 127
    %s41 = smul.u32 0, 128
    %v42 = vstv %s41
    %v43 = vadd.s32 %v40, %v42
    %s44 = sld [smem:[#allocation4]]
    %s45 = sld [smem:[#allocation3]]
    %v46 = vstv %s45
    %vm47 = vcmp.ge.s32.totalorder %v43, %v46
    %v48 = vstv %s44
    %v49 = vsel %vm47, %v48, 0
    %s50 = sld [smem:[#allocation4 + $0x1]]
    %s51 = ssub.s32 %s50, %s44
    %s52 = sld [smem:[#allocation3 + $0x1]]
    %v53 = vstv %s52
    %vm54 = vcmp.ge.s32.totalorder %v43, %v53
    %v55 = vstv %s51
    %v56 = vsel %vm54, %v55, 0
    %v57 = vadd.s32 %v49, %v56
    %s58 = sld [smem:[#allocation4 + $0x2]]
    %s59 = ssub.s32 %s58, %s50
    %s60 = sld [smem:[#allocation3 + $0x2]]
    %v61 = vstv %s60
    %vm62 = vcmp.ge.s32.totalorder %v43, %v61
    %v63 = vstv %s59
    %v64 = vsel %vm62, %v63, 0
    %v65 = vadd.s32 %v57, %v64
    %v66 = vcvt.s32.f32 %v65
    %67 = vst [vmem:[#allocation8] sm:$0x1] %v66
    %68 = vst [vmem:[#allocation8 + $0x1] sm:$0xf] %v38
    // Predicated region
    $region10: #{tpu_custom_call.1} parent=1 // pred_check
      _
    $region11: #{tpu_custom_call.1} parent=1 // pred_check_branch
      %70 = sbr.rel (0) target = $region13
    $region12: #{tpu_custom_call.1} parent=1 // pred_region
      %s72 = ssub.s32 128, 128
      %73 = vsyncadd [#allocation7], %s72
      %s75 = sshll.u32 [#allocation8], 4
      %s76 = int_to_ptr.vmem [resolvable:$true] %s75
      %78 = dma.vmem_to_hbm [thread:$0]  %s76, 128, %s3, [#allocation7]
    $region13: #{tpu_custom_call.1} parent=1 // pred_fallthru
      _
    // Predicated region
    $region14: #{tpu_custom_call.1} parent=1 // pred_check
      _
    $region15: #{tpu_custom_call.1} parent=1 // pred_check_branch
      %80 = sbr.rel (0) target = $region17
    $region16: #{tpu_custom_call.1} parent=1 // pred_region
      %81 = dma.done [#allocation7], 128
    $region17: #{tpu_custom_call.1} parent=1 // pred_fallthru
      _
    %82 = vsyncpa [#allocation6], 1
    %83 = vsyncpa [#allocation7], 1

</llo_original>
